<compile_context>
chip_gen: v7x
topology: tpu7x:2x2x1
jax: 0.10.0
libtpu: 0.0.40
codegen_flags: <defaults>
</compile_context>

<pallas_src>
import functools

import jax
import jax.numpy as jnp
from jax.experimental import pallas as pl
from jax.experimental.pallas import tpu as pltpu


def _geodesic_ode_kernel(x_ref, w_ref, wt_ref, b_ref, out_ref, *, D, use_mxu):
    c = x_ref[:D, :]                    # (D, Tblk)  curve points
    dc = x_ref[D:, :]                   # (D, Tblk)  curve velocities
    b = b_ref[...]                      # (D, 1)     metric bias

    if use_mxu:
        # Large D: contractions are worth MXU pushes.
        W = w_ref[...]
        Wt = wt_ref[...]
        z = jnp.dot(W, c, preferred_element_type=jnp.float32) + b
        wdc = jnp.dot(W, dc, preferred_element_type=jnp.float32)
    else:
        # Small D: three 8-wide contractions would use <1% of the MXU and pay
        # push + result-FIFO latency each; do them as unrolled VPU
        # broadcast-FMAs instead (column of W broadcast over lanes, row of
        # c/dc broadcast over sublanes).
        z_acc = jnp.zeros_like(c)
        wdc = jnp.zeros_like(c)
        for j in range(D):
            wcol = w_ref[:, j:j + 1]               # (D, 1) column of W
            z_acc = z_acc + wcol * c[j:j + 1, :]
            wdc = wdc + wcol * dc[j:j + 1, :]
        z = z_acc + b

    # Shared exponential for softplus and sigmoid (one EUP exp per element).
    e = jnp.exp(-jnp.abs(z))
    M = jnp.maximum(z, 0.0) + jnp.log(1.0 + e)         # softplus(z): diag metric
    inv_1pe = pl.reciprocal(1.0 + e, approx=True)      # EUP vrcp (error harmless here)
    S = jnp.where(z >= 0.0, inv_1pe, e * inv_1pe)      # sigmoid(z) = dM/dz

    # term1[k,t] = sum_j dM_k/dc_j * dc_j   = S_k * (W @ dc)_k
    term1 = S * wdc
    # term2[k,t] = sum_j dM_j/dc_k * dc_j^2 = (W^T @ (S * dc^2))_k
    y = S * dc * dc
    if use_mxu:
        term2 = jnp.dot(wt_ref[...], y, preferred_element_type=jnp.float32)
    else:
        term2 = jnp.zeros_like(c)
        for j in range(D):
            term2 = term2 + wt_ref[:, j:j + 1] * y[j:j + 1, :]

    # Exact division by M (accumulated per-eval bias matters inside an ODE
    # integrator; the kernel is DMA-bound so the divide is free).
    ddc = (0.5 * term2 - term1 * dc) / M

    # Fused passthrough + second derivatives via two aligned slice stores
    # (no concatenate -> no extra (2D, Tblk) vreg-to-vreg copy).
    out_ref[:D, :] = dc.astype(out_ref.dtype)
    out_ref[D:, :] = ddc.astype(out_ref.dtype)


def _choose_t_block(Tp):
    """Pick a lane tile for a (padded) T that is a multiple of 128.

    Guarantees >= 2 grid steps once Tp >= 256 (so dimension_semantics
    'parallel' can actually shard time tiles onto v7x's two TensorCores) and
    caps tiles at 8192 lanes (a (16, 8192) f32 block is only 512 KiB, so
    double-buffered in+out stays ~2 MiB while amortizing per-step overhead).
    """
    m = Tp // 128
    if m <= 1:
        return Tp
    cap = min(m // 2, 64)               # <= 8192 lanes, >= 2 grid steps
    for k in range(cap, 0, -1):
        if m % k == 0:
            return 128 * k
    return 128


def geodesic_ode_rhs(x, W, Wt, b_col, *, t_block=None):
    """Fused geodesic ODE right-hand side.

    x     : (2D, T) f32 state; rows [:D] points c, rows [D:] velocities dc.
    W, Wt : (D, D)  f32 metric weights and their transpose (host-precomputed).
    b_col : (D, 1)  f32 metric bias.
    returns dx : (2D, T) f32 with dx[:D] = dc, dx[D:] = ddc.
    """
    twoD, T = x.shape
    D = twoD // 2

    # Lane-dense time axis: pad T up to a multiple of 128 so every vreg lane
    # is filled and all stores are unmasked. Padding columns are zeros
    # (M = softplus(b) > 0, so no NaN/Inf); they are sliced off below.
    Tp = ((T + 127) // 128) * 128
    x_p = x if Tp == T else jnp.pad(x, ((0, 0), (0, Tp - T)))

    if t_block is None or Tp % t_block != 0:
        t_block = _choose_t_block(Tp)
    grid = (Tp // t_block,)

    # VMEM budget: double-buffered in+out blocks + resident W/Wt/b, with
    # headroom. Explicit limit keeps v5e (16 MiB scoped default) and v7x
    # (64 MiB physical VMEM) both safe for the same tiling.
    block_bytes = twoD * t_block * 4
    resident_bytes = (2 * D * D + D) * 4
    vmem_limit = int(min(64 << 20,
                         max(16 << 20, 4 * block_bytes + resident_bytes + (2 << 20))))

    use_mxu = D > 16
    kernel = functools.partial(_geodesic_ode_kernel, D=D, use_mxu=use_mxu)

    out = pl.pallas_call(
        kernel,
        out_shape=jax.ShapeDtypeStruct((twoD, Tp), jnp.float32),
        grid_spec=pltpu.PrefetchScalarGridSpec(
            num_scalar_prefetch=0,
            grid=grid,
            in_specs=[
                pl.BlockSpec((twoD, t_block), lambda i: (0, i)),  # x (state)
                pl.BlockSpec((D, D), lambda i: (0, 0)),           # W   (resident)
                pl.BlockSpec((D, D), lambda i: (0, 0)),           # W^T (resident)
                pl.BlockSpec((D, 1), lambda i: (0, 0)),           # b   (resident)
            ],
            out_specs=pl.BlockSpec((twoD, t_block), lambda i: (0, i)),
        ),
        compiler_params=pltpu.CompilerParams(
            dimension_semantics=("parallel",),      # shards time tiles on v7x's 2 TCs
            vmem_limit_bytes=vmem_limit,
        ),
    )(x_p, W, Wt, b_col)

    return out if Tp == T else out[:, :T]


class GeodesicODE:
    """JAX/Pallas port of stochman's GeodesicODE.

    The torch module delegates to an abstract `manifold.geodesic_system`;
    here the manifold is a concrete synthetic softplus diagonal-metric
    manifold parameterized by (W, b).
    """

    def __init__(self, W, b):
        self.W = jnp.asarray(W, jnp.float32)
        self.Wt = self.W.T                                   # hoisted transpose
        self.b_col = jnp.asarray(b, jnp.float32).reshape(-1, 1)

    @functools.partial(jax.jit, static_argnums=0)
    def forward(self, t, x):
        """
        t : (T,)    float32 time points (the autonomous RHS ignores t)
        x : (2D, T) float32 state: x[:D] points, x[D:] velocities
        returns dx : (2D, T) float32: dx[:D] = x[D:], dx[D:] = second derivs
        """
        del t  # only the shape of x matters for the autonomous geodesic RHS
        return geodesic_ode_rhs(x.astype(jnp.float32), self.W, self.Wt, self.b_col)

    def __call__(self, t, x):
        return self.forward(t, x)


def _reference_ddc(c_dt, dc_dt, W, b):
    """Pure-JAX reference in (D, T) layout for validation."""
    z = W @ c_dt + b[:, None]
    M = jax.nn.softplus(z)
    S = jax.nn.sigmoid(z)
    term1 = S * (W @ dc_dt)
    term2 = W.T @ (S * dc_dt * dc_dt)
    return -0.5 * (2.0 * term1 * dc_dt - term2) / M


if __name__ == "__main__":
    key = jax.random.PRNGKey(0)
    k_w, k_b, k_x = jax.random.split(key, 3)

    D = 8    # manifold dimension (multiple of 8: keeps slices sublane-aligned)
    T = 16   # number of time points (padded to 128 lanes inside the wrapper)

    # Deterministic synthetic metric parameters.
    W = 0.1 * jax.random.normal(k_w, (D, D), dtype=jnp.float32)
    b = 0.05 * jax.random.normal(k_b, (D,), dtype=jnp.float32)

    ode = GeodesicODE(W, b)

    t = jnp.linspace(0.0, 1.0, T, dtype=jnp.float32)
    x = jax.random.normal(k_x, (2 * D, T), dtype=jnp.float32)

    dx = jax.block_until_ready(ode(t, x))

    assert dx.shape == (2 * D, T)
    assert dx.dtype == jnp.float32
    # First block of the output must be exactly the velocity block of x.
    assert bool(jnp.array_equal(dx[:D], x[D:]))
    # Second block vs. pure-JAX reference (1/M now exact; only the sigmoid
    # denominator uses the approx EUP reciprocal).
    ddc_ref = _reference_ddc(x[:D], x[D:], W, b)
    assert bool(jnp.allclose(dx[D:], ddc_ref, rtol=1e-2, atol=1e-3))

    print("KERNEL_OK")
</pallas_src>

<mosaic_0001>
module attributes {stable_mosaic.version = 11 : i64} {
  func.func @_geodesic_ode_kernel(%arg0: i32, %arg1: memref<16x128xf32, #tpu.memory_space<vmem>>, %arg2: memref<8x8xf32, #tpu.memory_space<vmem>>, %arg3: memref<8x8xf32, #tpu.memory_space<vmem>>, %arg4: memref<8x1xf32, #tpu.memory_space<vmem>>, %arg5: memref<16x128xf32, #tpu.memory_space<vmem>>) attributes {dimension_semantics = [#tpu.dimension_semantics<parallel>], iteration_bounds = array<i64: 1>, scalar_prefetch = 0 : i64, scratch_operands = 0 : i64, tpu.core_type = #tpu.core_type<tc>, window_params = [{transform_indices = @transform_0, window_bounds = array<i64: 16, 128>}, {pipeline_mode = #tpu.pipeline_mode<synchronous>, transform_indices = @transform_1, window_bounds = array<i64: 8, 8>}, {pipeline_mode = #tpu.pipeline_mode<synchronous>, transform_indices = @transform_2, window_bounds = array<i64: 8, 8>}, {pipeline_mode = #tpu.pipeline_mode<synchronous>, transform_indices = @transform_3, window_bounds = array<i64: 8, 1>}, {transform_indices = @transform_4, window_bounds = array<i64: 16, 128>}]} {
    %c0 = arith.constant 0 : index
    %c0_0 = arith.constant 0 : index
    %0 = vector.load %arg1[%c0, %c0_0] : memref<16x128xf32, #tpu.memory_space<vmem>>, vector<8x128xf32>
    %c8 = arith.constant 8 : index
    %c0_1 = arith.constant 0 : index
    %1 = vector.load %arg1[%c8, %c0_1] : memref<16x128xf32, #tpu.memory_space<vmem>>, vector<8x128xf32>
    %c0_2 = arith.constant 0 : index
    %c0_3 = arith.constant 0 : index
    %2 = vector.load %arg4[%c0_2, %c0_3] : memref<8x1xf32, #tpu.memory_space<vmem>>, vector<8x1xf32>
    %cst = arith.constant 0.000000e+00 : f32
    %3 = vector.broadcast %cst : f32 to vector<8x128xf32>
    %cst_4 = arith.constant 0.000000e+00 : f32
    %4 = vector.broadcast %cst_4 : f32 to vector<8x128xf32>
    %c0_5 = arith.constant 0 : index
    %c0_6 = arith.constant 0 : index
    %5 = vector.load %arg2[%c0_5, %c0_6] : memref<8x8xf32, #tpu.memory_space<vmem>>, vector<8x1xf32>
    %6 = vector.extract_strided_slice %0 {offsets = [0, 0], sizes = [1, 128], strides = [1, 1]} : vector<8x128xf32> to vector<1x128xf32>
    %7 = vector.broadcast %5 : vector<8x1xf32> to vector<8x128xf32>
    %8 = vector.broadcast %6 : vector<1x128xf32> to vector<8x128xf32>
    %9 = arith.mulf %7, %8 : vector<8x128xf32>
    %10 = arith.addf %3, %9 : vector<8x128xf32>
    %11 = vector.extract_strided_slice %1 {offsets = [0, 0], sizes = [1, 128], strides = [1, 1]} : vector<8x128xf32> to vector<1x128xf32>
    %12 = vector.broadcast %5 : vector<8x1xf32> to vector<8x128xf32>
    %13 = vector.broadcast %11 : vector<1x128xf32> to vector<8x128xf32>
    %14 = arith.mulf %12, %13 : vector<8x128xf32>
    %15 = arith.addf %4, %14 : vector<8x128xf32>
    %c0_7 = arith.constant 0 : index
    %c1 = arith.constant 1 : index
    %16 = vector.load %arg2[%c0_7, %c1] : memref<8x8xf32, #tpu.memory_space<vmem>>, vector<8x1xf32>
    %17 = vector.extract_strided_slice %0 {offsets = [1, 0], sizes = [1, 128], strides = [1, 1]} : vector<8x128xf32> to vector<1x128xf32>
    %18 = vector.broadcast %16 : vector<8x1xf32> to vector<8x128xf32>
    %19 = vector.broadcast %17 : vector<1x128xf32> to vector<8x128xf32>
    %20 = arith.mulf %18, %19 : vector<8x128xf32>
    %21 = arith.addf %10, %20 : vector<8x128xf32>
    %22 = vector.extract_strided_slice %1 {offsets = [1, 0], sizes = [1, 128], strides = [1, 1]} : vector<8x128xf32> to vector<1x128xf32>
    %23 = vector.broadcast %16 : vector<8x1xf32> to vector<8x128xf32>
    %24 = vector.broadcast %22 : vector<1x128xf32> to vector<8x128xf32>
    %25 = arith.mulf %23, %24 : vector<8x128xf32>
    %26 = arith.addf %15, %25 : vector<8x128xf32>
    %c0_8 = arith.constant 0 : index
    %c2 = arith.constant 2 : index
    %27 = vector.load %arg2[%c0_8, %c2] : memref<8x8xf32, #tpu.memory_space<vmem>>, vector<8x1xf32>
    %28 = vector.extract_strided_slice %0 {offsets = [2, 0], sizes = [1, 128], strides = [1, 1]} : vector<8x128xf32> to vector<1x128xf32>
    %29 = vector.broadcast %27 : vector<8x1xf32> to vector<8x128xf32>
    %30 = vector.broadcast %28 : vector<1x128xf32> to vector<8x128xf32>
    %31 = arith.mulf %29, %30 : vector<8x128xf32>
    %32 = arith.addf %21, %31 : vector<8x128xf32>
    %33 = vector.extract_strided_slice %1 {offsets = [2, 0], sizes = [1, 128], strides = [1, 1]} : vector<8x128xf32> to vector<1x128xf32>
    %34 = vector.broadcast %27 : vector<8x1xf32> to vector<8x128xf32>
    %35 = vector.broadcast %33 : vector<1x128xf32> to vector<8x128xf32>
    %36 = arith.mulf %34, %35 : vector<8x128xf32>
    %37 = arith.addf %26, %36 : vector<8x128xf32>
    %c0_9 = arith.constant 0 : index
    %c3 = arith.constant 3 : index
    %38 = vector.load %arg2[%c0_9, %c3] : memref<8x8xf32, #tpu.memory_space<vmem>>, vector<8x1xf32>
    %39 = vector.extract_strided_slice %0 {offsets = [3, 0], sizes = [1, 128], strides = [1, 1]} : vector<8x128xf32> to vector<1x128xf32>
    %40 = vector.broadcast %38 : vector<8x1xf32> to vector<8x128xf32>
    %41 = vector.broadcast %39 : vector<1x128xf32> to vector<8x128xf32>
    %42 = arith.mulf %40, %41 : vector<8x128xf32>
    %43 = arith.addf %32, %42 : vector<8x128xf32>
    %44 = vector.extract_strided_slice %1 {offsets = [3, 0], sizes = [1, 128], strides = [1, 1]} : vector<8x128xf32> to vector<1x128xf32>
    %45 = vector.broadcast %38 : vector<8x1xf32> to vector<8x128xf32>
    %46 = vector.broadcast %44 : vector<1x128xf32> to vector<8x128xf32>
    %47 = arith.mulf %45, %46 : vector<8x128xf32>
    %48 = arith.addf %37, %47 : vector<8x128xf32>
    %c0_10 = arith.constant 0 : index
    %c4 = arith.constant 4 : index
    %49 = vector.load %arg2[%c0_10, %c4] : memref<8x8xf32, #tpu.memory_space<vmem>>, vector<8x1xf32>
    %50 = vector.extract_strided_slice %0 {offsets = [4, 0], sizes = [1, 128], strides = [1, 1]} : vector<8x128xf32> to vector<1x128xf32>
    %51 = vector.broadcast %49 : vector<8x1xf32> to vector<8x128xf32>
    %52 = vector.broadcast %50 : vector<1x128xf32> to vector<8x128xf32>
    %53 = arith.mulf %51, %52 : vector<8x128xf32>
    %54 = arith.addf %43, %53 : vector<8x128xf32>
    %55 = vector.extract_strided_slice %1 {offsets = [4, 0], sizes = [1, 128], strides = [1, 1]} : vector<8x128xf32> to vector<1x128xf32>
    %56 = vector.broadcast %49 : vector<8x1xf32> to vector<8x128xf32>
    %57 = vector.broadcast %55 : vector<1x128xf32> to vector<8x128xf32>
    %58 = arith.mulf %56, %57 : vector<8x128xf32>
    %59 = arith.addf %48, %58 : vector<8x128xf32>
    %c0_11 = arith.constant 0 : index
    %c5 = arith.constant 5 : index
    %60 = vector.load %arg2[%c0_11, %c5] : memref<8x8xf32, #tpu.memory_space<vmem>>, vector<8x1xf32>
    %61 = vector.extract_strided_slice %0 {offsets = [5, 0], sizes = [1, 128], strides = [1, 1]} : vector<8x128xf32> to vector<1x128xf32>
    %62 = vector.broadcast %60 : vector<8x1xf32> to vector<8x128xf32>
    %63 = vector.broadcast %61 : vector<1x128xf32> to vector<8x128xf32>
    %64 = arith.mulf %62, %63 : vector<8x128xf32>
    %65 = arith.addf %54, %64 : vector<8x128xf32>
    %66 = vector.extract_strided_slice %1 {offsets = [5, 0], sizes = [1, 128], strides = [1, 1]} : vector<8x128xf32> to vector<1x128xf32>
    %67 = vector.broadcast %60 : vector<8x1xf32> to vector<8x128xf32>
    %68 = vector.broadcast %66 : vector<1x128xf32> to vector<8x128xf32>
    %69 = arith.mulf %67, %68 : vector<8x128xf32>
    %70 = arith.addf %59, %69 : vector<8x128xf32>
    %c0_12 = arith.constant 0 : index
    %c6 = arith.constant 6 : index
    %71 = vector.load %arg2[%c0_12, %c6] : memref<8x8xf32, #tpu.memory_space<vmem>>, vector<8x1xf32>
    %72 = vector.extract_strided_slice %0 {offsets = [6, 0], sizes = [1, 128], strides = [1, 1]} : vector<8x128xf32> to vector<1x128xf32>
    %73 = vector.broadcast %71 : vector<8x1xf32> to vector<8x128xf32>
    %74 = vector.broadcast %72 : vector<1x128xf32> to vector<8x128xf32>
    %75 = arith.mulf %73, %74 : vector<8x128xf32>
    %76 = arith.addf %65, %75 : vector<8x128xf32>
    %77 = vector.extract_strided_slice %1 {offsets = [6, 0], sizes = [1, 128], strides = [1, 1]} : vector<8x128xf32> to vector<1x128xf32>
    %78 = vector.broadcast %71 : vector<8x1xf32> to vector<8x128xf32>
    %79 = vector.broadcast %77 : vector<1x128xf32> to vector<8x128xf32>
    %80 = arith.mulf %78, %79 : vector<8x128xf32>
    %81 = arith.addf %70, %80 : vector<8x128xf32>
    %c0_13 = arith.constant 0 : index
    %c7 = arith.constant 7 : index
    %82 = vector.load %arg2[%c0_13, %c7] : memref<8x8xf32, #tpu.memory_space<vmem>>, vector<8x1xf32>
    %83 = vector.extract_strided_slice %0 {offsets = [7, 0], sizes = [1, 128], strides = [1, 1]} : vector<8x128xf32> to vector<1x128xf32>
    %84 = vector.broadcast %82 : vector<8x1xf32> to vector<8x128xf32>
    %85 = vector.broadcast %83 : vector<1x128xf32> to vector<8x128xf32>
    %86 = arith.mulf %84, %85 : vector<8x128xf32>
    %87 = arith.addf %76, %86 : vector<8x128xf32>
    %88 = vector.extract_strided_slice %1 {offsets = [7, 0], sizes = [1, 128], strides = [1, 1]} : vector<8x128xf32> to vector<1x128xf32>
    %89 = vector.broadcast %82 : vector<8x1xf32> to vector<8x128xf32>
    %90 = vector.broadcast %88 : vector<1x128xf32> to vector<8x128xf32>
    %91 = arith.mulf %89, %90 : vector<8x128xf32>
    %92 = arith.addf %81, %91 : vector<8x128xf32>
    %93 = vector.broadcast %2 : vector<8x1xf32> to vector<8x128xf32>
    %94 = arith.addf %87, %93 : vector<8x128xf32>
    %95 = math.absf %94 : vector<8x128xf32>
    %cst_14 = arith.constant 0.000000e+00 : f32
    %96 = vector.broadcast %cst_14 : f32 to vector<8x128xf32>
    %97 = arith.subf %96, %95 : vector<8x128xf32>
    %98 = math.exp %97 : vector<8x128xf32>
    %cst_15 = arith.constant 0.000000e+00 : f32
    %99 = vector.broadcast %cst_15 : f32 to vector<8x128xf32>
    %100 = arith.maximumf %94, %99 : vector<8x128xf32>
    %cst_16 = arith.constant 1.000000e+00 : f32
    %101 = vector.broadcast %cst_16 : f32 to vector<8x128xf32>
    %102 = arith.addf %101, %98 : vector<8x128xf32>
    %103 = math.log %102 : vector<8x128xf32>
    %104 = arith.addf %100, %103 : vector<8x128xf32>
    %cst_17 = arith.constant 1.000000e+00 : f32
    %105 = vector.broadcast %cst_17 : f32 to vector<8x128xf32>
    %106 = arith.addf %105, %98 : vector<8x128xf32>
    %107 = tpu.reciprocal %106 {approx = true} : vector<8x128xf32> -> vector<8x128xf32>
    %cst_18 = arith.constant 0.000000e+00 : f32
    %108 = vector.broadcast %cst_18 : f32 to vector<8x128xf32>
    %109 = arith.cmpf oge, %94, %108 : vector<8x128xf32>
    %110 = arith.mulf %98, %107 : vector<8x128xf32>
    %111 = arith.select %109, %107, %110 : vector<8x128xi1>, vector<8x128xf32>
    %112 = arith.mulf %111, %92 : vector<8x128xf32>
    %113 = arith.mulf %111, %1 : vector<8x128xf32>
    %114 = arith.mulf %113, %1 : vector<8x128xf32>
    %cst_19 = arith.constant 0.000000e+00 : f32
    %115 = vector.broadcast %cst_19 : f32 to vector<8x128xf32>
    %c0_20 = arith.constant 0 : index
    %c0_21 = arith.constant 0 : index
    %116 = vector.load %arg3[%c0_20, %c0_21] : memref<8x8xf32, #tpu.memory_space<vmem>>, vector<8x1xf32>
    %117 = vector.extract_strided_slice %114 {offsets = [0, 0], sizes = [1, 128], strides = [1, 1]} : vector<8x128xf32> to vector<1x128xf32>
    %118 = vector.broadcast %116 : vector<8x1xf32> to vector<8x128xf32>
    %119 = vector.broadcast %117 : vector<1x128xf32> to vector<8x128xf32>
    %120 = arith.mulf %118, %119 : vector<8x128xf32>
    %121 = arith.addf %115, %120 : vector<8x128xf32>
    %c0_22 = arith.constant 0 : index
    %c1_23 = arith.constant 1 : index
    %122 = vector.load %arg3[%c0_22, %c1_23] : memref<8x8xf32, #tpu.memory_space<vmem>>, vector<8x1xf32>
    %123 = vector.extract_strided_slice %114 {offsets = [1, 0], sizes = [1, 128], strides = [1, 1]} : vector<8x128xf32> to vector<1x128xf32>
    %124 = vector.broadcast %122 : vector<8x1xf32> to vector<8x128xf32>
    %125 = vector.broadcast %123 : vector<1x128xf32> to vector<8x128xf32>
    %126 = arith.mulf %124, %125 : vector<8x128xf32>
    %127 = arith.addf %121, %126 : vector<8x128xf32>
    %c0_24 = arith.constant 0 : index
    %c2_25 = arith.constant 2 : index
    %128 = vector.load %arg3[%c0_24, %c2_25] : memref<8x8xf32, #tpu.memory_space<vmem>>, vector<8x1xf32>
    %129 = vector.extract_strided_slice %114 {offsets = [2, 0], sizes = [1, 128], strides = [1, 1]} : vector<8x128xf32> to vector<1x128xf32>
    %130 = vector.broadcast %128 : vector<8x1xf32> to vector<8x128xf32>
    %131 = vector.broadcast %129 : vector<1x128xf32> to vector<8x128xf32>
    %132 = arith.mulf %130, %131 : vector<8x128xf32>
    %133 = arith.addf %127, %132 : vector<8x128xf32>
    %c0_26 = arith.constant 0 : index
    %c3_27 = arith.constant 3 : index
    %134 = vector.load %arg3[%c0_26, %c3_27] : memref<8x8xf32, #tpu.memory_space<vmem>>, vector<8x1xf32>
    %135 = vector.extract_strided_slice %114 {offsets = [3, 0], sizes = [1, 128], strides = [1, 1]} : vector<8x128xf32> to vector<1x128xf32>
    %136 = vector.broadcast %134 : vector<8x1xf32> to vector<8x128xf32>
    %137 = vector.broadcast %135 : vector<1x128xf32> to vector<8x128xf32>
    %138 = arith.mulf %136, %137 : vector<8x128xf32>
    %139 = arith.addf %133, %138 : vector<8x128xf32>
    %c0_28 = arith.constant 0 : index
    %c4_29 = arith.constant 4 : index
    %140 = vector.load %arg3[%c0_28, %c4_29] : memref<8x8xf32, #tpu.memory_space<vmem>>, vector<8x1xf32>
    %141 = vector.extract_strided_slice %114 {offsets = [4, 0], sizes = [1, 128], strides = [1, 1]} : vector<8x128xf32> to vector<1x128xf32>
    %142 = vector.broadcast %140 : vector<8x1xf32> to vector<8x128xf32>
    %143 = vector.broadcast %141 : vector<1x128xf32> to vector<8x128xf32>
    %144 = arith.mulf %142, %143 : vector<8x128xf32>
    %145 = arith.addf %139, %144 : vector<8x128xf32>
    %c0_30 = arith.constant 0 : index
    %c5_31 = arith.constant 5 : index
    %146 = vector.load %arg3[%c0_30, %c5_31] : memref<8x8xf32, #tpu.memory_space<vmem>>, vector<8x1xf32>
    %147 = vector.extract_strided_slice %114 {offsets = [5, 0], sizes = [1, 128], strides = [1, 1]} : vector<8x128xf32> to vector<1x128xf32>
    %148 = vector.broadcast %146 : vector<8x1xf32> to vector<8x128xf32>
    %149 = vector.broadcast %147 : vector<1x128xf32> to vector<8x128xf32>
    %150 = arith.mulf %148, %149 : vector<8x128xf32>
    %151 = arith.addf %145, %150 : vector<8x128xf32>
    %c0_32 = arith.constant 0 : index
    %c6_33 = arith.constant 6 : index
    %152 = vector.load %arg3[%c0_32, %c6_33] : memref<8x8xf32, #tpu.memory_space<vmem>>, vector<8x1xf32>
    %153 = vector.extract_strided_slice %114 {offsets = [6, 0], sizes = [1, 128], strides = [1, 1]} : vector<8x128xf32> to vector<1x128xf32>
    %154 = vector.broadcast %152 : vector<8x1xf32> to vector<8x128xf32>
    %155 = vector.broadcast %153 : vector<1x128xf32> to vector<8x128xf32>
    %156 = arith.mulf %154, %155 : vector<8x128xf32>
    %157 = arith.addf %151, %156 : vector<8x128xf32>
    %c0_34 = arith.constant 0 : index
    %c7_35 = arith.constant 7 : index
    %158 = vector.load %arg3[%c0_34, %c7_35] : memref<8x8xf32, #tpu.memory_space<vmem>>, vector<8x1xf32>
    %159 = vector.extract_strided_slice %114 {offsets = [7, 0], sizes = [1, 128], strides = [1, 1]} : vector<8x128xf32> to vector<1x128xf32>
    %160 = vector.broadcast %158 : vector<8x1xf32> to vector<8x128xf32>
    %161 = vector.broadcast %159 : vector<1x128xf32> to vector<8x128xf32>
    %162 = arith.mulf %160, %161 : vector<8x128xf32>
    %163 = arith.addf %157, %162 : vector<8x128xf32>
    %cst_36 = arith.constant 5.000000e-01 : f32
    %164 = vector.broadcast %cst_36 : f32 to vector<8x128xf32>
    %165 = arith.mulf %164, %163 : vector<8x128xf32>
    %166 = arith.mulf %112, %1 : vector<8x128xf32>
    %167 = arith.subf %165, %166 : vector<8x128xf32>
    %168 = arith.divf %167, %104 : vector<8x128xf32>
    %c0_37 = arith.constant 0 : index
    %c0_38 = arith.constant 0 : index
    %169 = vector.load %arg5[%c0_37, %c0_38] : memref<16x128xf32, #tpu.memory_space<vmem>>, vector<8x128xf32>
    tpu.vector_store %arg5[%c0_37, %c0_38], %1 {strides = array<i32>} : memref<16x128xf32, #tpu.memory_space<vmem>>, vector<8x128xf32>,
    %c8_39 = arith.constant 8 : index
    %c0_40 = arith.constant 0 : index
    %170 = vector.load %arg5[%c8_39, %c0_40] : memref<16x128xf32, #tpu.memory_space<vmem>>, vector<8x128xf32>
    tpu.vector_store %arg5[%c8_39, %c0_40], %168 {strides = array<i32>} : memref<16x128xf32, #tpu.memory_space<vmem>>, vector<8x128xf32>,
    return
  }
  func.func @transform_0(%arg0: i32) -> (i32, i32) {
    %c0_i32 = arith.constant 0 : i32
    %c0_i32_0 = arith.constant 0 : i32
    return %c0_i32, %arg0 : i32, i32
  }
  func.func @transform_1(%arg0: i32) -> (i32, i32) {
    %c0_i32 = arith.constant 0 : i32
    %c0_i32_0 = arith.constant 0 : i32
    %c0_i32_1 = arith.constant 0 : i32
    return %c0_i32, %c0_i32_0 : i32, i32
  }
  func.func @transform_2(%arg0: i32) -> (i32, i32) {
    %c0_i32 = arith.constant 0 : i32
    %c0_i32_0 = arith.constant 0 : i32
    %c0_i32_1 = arith.constant 0 : i32
    return %c0_i32, %c0_i32_0 : i32, i32
  }
  func.func @transform_3(%arg0: i32) -> (i32, i32) {
    %c0_i32 = arith.constant 0 : i32
    %c0_i32_0 = arith.constant 0 : i32
    %c0_i32_1 = arith.constant 0 : i32
    return %c0_i32, %c0_i32_0 : i32, i32
  }
  func.func @transform_4(%arg0: i32) -> (i32, i32) {
    %c0_i32 = arith.constant 0 : i32
    %c0_i32_0 = arith.constant 0 : i32
    return %c0_i32, %arg0 : i32, i32
  }
}

</mosaic_0001>

<llo_original>
// kernel: forward.1
$region0: #{forward.1}
  #allocation0 [shape = 'u32[]', space=smem, size = 0x4, offset = 0x4, fixed_abs, tag = 'smem constant byte address 0x4 - core index']
  #allocation1 [shape = 'u32[144,128]{1,0:T(1,128)}', space=vmem, size = 0x12000, scoped, tag = 'internal scratch']
  %s0 = inlined_call_operand.vmem [shape: f32[16,128], index: 0, kind: input, shape index: {}]
  %s1 = inlined_call_operand.vmem [shape: f32[8,8], index: 1, kind: input, shape index: {}]
  %s2 = inlined_call_operand.vmem [shape: f32[8,8], index: 2, kind: input, shape index: {}]
  %s3 = inlined_call_operand.vmem [shape: f32[8,1], index: 3, kind: input, shape index: {}]
  %s4 = inlined_call_operand.hbm [shape: f32[16,128], index: 4, kind: output, shape index: {}]
  %s5 = sld [smem:[#allocation0]]
  $region26: #{forward.1} parent=0
    _
  %s7 = ssub.s32 1, %s5
  %s8 = scalar_select 0, %s7, %s5
  $region1: #{forward.1} parent=0
    #allocation2 [shape = 'u8[8192]{0}', space=vmem, size = 0x2000, scoped, tag = 'output window, operand 0, single buffered']
    #allocation3 [shape = 's32[1]{0}', space=sflag, size = 0x4, scoped, tag = 'scoped memory for forward.1']
    %9 = vsyncpa [#allocation3], 0
    // Predicated region
    $region2: #{forward.1} parent=1 // pred_check
      _
    $region3: #{forward.1} parent=1 // pred_check_branch
      %11 = sbr.rel (0) target = $region5
    $region4: #{forward.1} parent=1 // pred_region
      _
    $region5: #{forward.1} parent=1 // pred_fallthru
      _
    // Predicated region
    $region6: #{forward.1} parent=1 // pred_check
      _
    $region7: #{forward.1} parent=1 // pred_check_branch
      %13 = sbr.rel (0) target = $region9
    $region8: #{forward.1} parent=1 // pred_region
      _
    $region9: #{forward.1} parent=1 // pred_fallthru
      _
    // Predicated region
    $region10: #{forward.1} parent=1 // pred_check
      _
    $region11: #{forward.1} parent=1 // pred_check_branch
      %15 = sbr.rel (0) target = $region13
    $region12: #{forward.1} parent=1 // pred_region
      _
    $region13: #{forward.1} parent=1 // pred_fallthru
      _
    // Predicated region
    $region14: #{forward.1} parent=1 // pred_check
      _
    $region15: #{forward.1} parent=1 // pred_check_branch
      %17 = sbr.rel (0) target = $region17
    $region16: #{forward.1} parent=1 // pred_region
      _
    $region17: #{forward.1} parent=1 // pred_fallthru
      _
    %v18 = vld [vmem:[%s0] sm:$0xff]
    %v19 = vld [vmem:[%s0 + $0x8] sm:$0xff]
    %v20 = vld [vmem:[%s3] sm:$0xff]
    %v21 = vld [vmem:[%s1] sm:$0xff]
    %23 = vset.pattern.permute.xlu0 0
    %24 = vperm.xlu0 %23, %v21
    %v25 = vpop.permute.xlu0 %24
    %v27 = vlaneseq
    %v28 = vshrl.u32 %v27, 7
    %v29 = vsub.s32 0, %v28
    %v30 = vrot.slane %v18, %v29
    %v31 = vmul.f32 %v25, %v30
    %v32 = vadd.f32 %v31, 0.0
    %v33 = vlaneseq
    %v34 = vshrl.u32 %v33, 7
    %v35 = vsub.s32 0, %v34
    %v36 = vrot.slane %v19, %v35
    %v37 = vmul.f32 %v25, %v36
    %v38 = vadd.f32 %v37, 0.0
    %39 = vset.pattern.permute.xlu0 1
    %40 = vperm.xlu0 %39, %v21
    %v41 = vpop.permute.xlu0 %40
    %v43 = vlaneseq
    %v44 = vshrl.u32 %v43, 7
    %v45 = vsub.s32 1, %v44
    %v46 = vrot.slane %v18, %v45
    %v47 = vmul.f32 %v41, %v46
    %v48 = vadd.f32 %v32, %v47
    %v49 = vlaneseq
    %v50 = vshrl.u32 %v49, 7
    %v51 = vsub.s32 1, %v50
    %v52 = vrot.slane %v19, %v51
    %v53 = vmul.f32 %v41, %v52
    %v54 = vadd.f32 %v38, %v53
    %55 = vset.pattern.permute.xlu0 2
    %56 = vperm.xlu0 %55, %v21
    %v57 = vpop.permute.xlu0 %56
    %v59 = vlaneseq
    %v60 = vshrl.u32 %v59, 7
    %v61 = vsub.s32 2, %v60
    %v62 = vrot.slane %v18, %v61
    %v63 = vmul.f32 %v57, %v62
    %v64 = vadd.f32 %v48, %v63
    %v65 = vlaneseq
    %v66 = vshrl.u32 %v65, 7
    %v67 = vsub.s32 2, %v66
    %v68 = vrot.slane %v19, %v67
    %v69 = vmul.f32 %v57, %v68
    %v70 = vadd.f32 %v54, %v69
    %71 = vset.pattern.permute.xlu0 3
    %72 = vperm.xlu0 %71, %v21
    %v73 = vpop.permute.xlu0 %72
    %v75 = vlaneseq
    %v76 = vshrl.u32 %v75, 7
    %v77 = vsub.s32 3, %v76
    %v78 = vrot.slane %v18, %v77
    %v79 = vmul.f32 %v73, %v78
    %v80 = vadd.f32 %v64, %v79
    %v81 = vlaneseq
    %v82 = vshrl.u32 %v81, 7
    %v83 = vsub.s32 3, %v82
    %v84 = vrot.slane %v19, %v83
    %v85 = vmul.f32 %v73, %v84
    %v86 = vadd.f32 %v70, %v85
    %87 = vset.pattern.permute.xlu0 4
    %88 = vperm.xlu0 %87, %v21
    %v89 = vpop.permute.xlu0 %88
    %v91 = vlaneseq
    %v92 = vshrl.u32 %v91, 7
    %v93 = vsub.s32 4, %v92
    %v94 = vrot.slane %v18, %v93
    %v95 = vmul.f32 %v89, %v94
    %v96 = vadd.f32 %v80, %v95
    %v97 = vlaneseq
    %v98 = vshrl.u32 %v97, 7
    %v99 = vsub.s32 4, %v98
    %v100 = vrot.slane %v19, %v99
    %v101 = vmul.f32 %v89, %v100
    %v102 = vadd.f32 %v86, %v101
    %103 = vset.pattern.permute.xlu0 5
    %104 = vperm.xlu0 %103, %v21
    %v105 = vpop.permute.xlu0 %104
    %v107 = vlaneseq
    %v108 = vshrl.u32 %v107, 7
    %v109 = vsub.s32 5, %v108
    %v110 = vrot.slane %v18, %v109
    %v111 = vmul.f32 %v105, %v110
    %v112 = vadd.f32 %v96, %v111
    %v113 = vlaneseq
    %v114 = vshrl.u32 %v113, 7
    %v115 = vsub.s32 5, %v114
    %v116 = vrot.slane %v19, %v115
    %v117 = vmul.f32 %v105, %v116
    %v118 = vadd.f32 %v102, %v117
    %119 = vset.pattern.permute.xlu0 6
    %120 = vperm.xlu0 %119, %v21
    %v121 = vpop.permute.xlu0 %120
    %v123 = vlaneseq
    %v124 = vshrl.u32 %v123, 7
    %v125 = vsub.s32 6, %v124
    %v126 = vrot.slane %v18, %v125
    %v127 = vmul.f32 %v121, %v126
    %v128 = vadd.f32 %v112, %v127
    %v129 = vlaneseq
    %v130 = vshrl.u32 %v129, 7
    %v131 = vsub.s32 6, %v130
    %v132 = vrot.slane %v19, %v131
    %v133 = vmul.f32 %v121, %v132
    %v134 = vadd.f32 %v118, %v133
    %135 = vset.pattern.permute.xlu0 7
    %136 = vperm.xlu0 %135, %v21
    %v137 = vpop.permute.xlu0 %136
    %v139 = vlaneseq
    %v140 = vshrl.u32 %v139, 7
    %v141 = vsub.s32 7, %v140
    %v142 = vrot.slane %v18, %v141
    %v143 = vmul.f32 %v137, %v142
    %v144 = vadd.f32 %v128, %v143
    %v145 = vlaneseq
    %v146 = vshrl.u32 %v145, 7
    %v147 = vsub.s32 7, %v146
    %v148 = vrot.slane %v19, %v147
    %v149 = vmul.f32 %v137, %v148
    %v150 = vadd.f32 %v134, %v149
    %152 = vset.pattern.permute.xlu0 0
    %153 = vperm.xlu0 %152, %v20
    %v154 = vpop.permute.xlu0 %153
    %v156 = vadd.f32 %v144, %v154
    %v157 = vand.u32 2147483647, %v156
    %v158 = vsub.f32 0.0, %v157
    %v159 = vmul.f32 %v158, 1.442695
    %v160 = vpow.pop %v159
    %v161 = vmax.f32 %v156, 0.0
    %v162 = vadd.f32 %v160, 1.0
    %v163 = vlog2.pop %v162
    %v164 = vmul.f32 %v163, 0.6931472
    %v165 = vadd.f32 %v161, %v164
    %v166 = vrcp.pop %v162
    %vm167 = vcmp.ge.f32.partialorder %v156, 0.0
    %v168 = vmul.f32 %v160, %v166
    %v169 = vsel %vm167, %v166, %v168
    %v170 = vmul.f32 %v169, %v150
    %v171 = vmul.f32 %v169, %v19
    %v172 = vmul.f32 %v171, %v19
    %v173 = vld [vmem:[%s2] sm:$0xff]
    %175 = vset.pattern.permute.xlu0 0
    %176 = vperm.xlu0 %175, %v173
    %v177 = vpop.permute.xlu0 %176
    %v179 = vlaneseq
    %v180 = vshrl.u32 %v179, 7
    %v181 = vsub.s32 0, %v180
    %v182 = vrot.slane %v172, %v181
    %v183 = vmul.f32 %v177, %v182
    %v184 = vadd.f32 %v183, 0.0
    %185 = vset.pattern.permute.xlu0 1
    %186 = vperm.xlu0 %185, %v173
    %v187 = vpop.permute.xlu0 %186
    %v189 = vlaneseq
    %v190 = vshrl.u32 %v189, 7
    %v191 = vsub.s32 1, %v190
    %v192 = vrot.slane %v172, %v191
    %v193 = vmul.f32 %v187, %v192
    %v194 = vadd.f32 %v184, %v193
    %195 = vset.pattern.permute.xlu0 2
    %196 = vperm.xlu0 %195, %v173
    %v197 = vpop.permute.xlu0 %196
    %v199 = vlaneseq
    %v200 = vshrl.u32 %v199, 7
    %v201 = vsub.s32 2, %v200
    %v202 = vrot.slane %v172, %v201
    %v203 = vmul.f32 %v197, %v202
    %v204 = vadd.f32 %v194, %v203
    %205 = vset.pattern.permute.xlu0 3
    %206 = vperm.xlu0 %205, %v173
    %v207 = vpop.permute.xlu0 %206
    %v209 = vlaneseq
    %v210 = vshrl.u32 %v209, 7
    %v211 = vsub.s32 3, %v210
    %v212 = vrot.slane %v172, %v211
    %v213 = vmul.f32 %v207, %v212
    %v214 = vadd.f32 %v204, %v213
    %215 = vset.pattern.permute.xlu0 4
    %216 = vperm.xlu0 %215, %v173
    %v217 = vpop.permute.xlu0 %216
    %v219 = vlaneseq
    %v220 = vshrl.u32 %v219, 7
    %v221 = vsub.s32 4, %v220
    %v222 = vrot.slane %v172, %v221
    %v223 = vmul.f32 %v217, %v222
    %v224 = vadd.f32 %v214, %v223
    %225 = vset.pattern.permute.xlu0 5
    %226 = vperm.xlu0 %225, %v173
    %v227 = vpop.permute.xlu0 %226
    %v229 = vlaneseq
    %v230 = vshrl.u32 %v229, 7
    %v231 = vsub.s32 5, %v230
    %v232 = vrot.slane %v172, %v231
    %v233 = vmul.f32 %v227, %v232
    %v234 = vadd.f32 %v224, %v233
    %235 = vset.pattern.permute.xlu0 6
    %236 = vperm.xlu0 %235, %v173
    %v237 = vpop.permute.xlu0 %236
    %v239 = vlaneseq
    %v240 = vshrl.u32 %v239, 7
    %v241 = vsub.s32 6, %v240
    %v242 = vrot.slane %v172, %v241
    %v243 = vmul.f32 %v237, %v242
    %v244 = vadd.f32 %v234, %v243
    %245 = vset.pattern.permute.xlu0 7
    %246 = vperm.xlu0 %245, %v173
    %v247 = vpop.permute.xlu0 %246
    %v249 = vlaneseq
    %v250 = vshrl.u32 %v249, 7
    %v251 = vsub.s32 7, %v250
    %v252 = vrot.slane %v172, %v251
    %v253 = vmul.f32 %v247, %v252
    %v254 = vadd.f32 %v244, %v253
    %v255 = vmul.f32 %v254, 0.5
    %v256 = vmul.f32 %v170, %v19
    %v257 = vsub.f32 %v255, %v256
    %v258 = vrcp.pop %v165
    %v259 = vmul.f32 %v257, %v258
    %260 = vst [vmem:[#allocation2] sm:$0xff] %v19
    %261 = vst [vmem:[#allocation2 + $0x8] sm:$0xff] %v259
    // Predicated region
    $region18: #{forward.1} parent=1 // pred_check
      _
    $region19: #{forward.1} parent=1 // pred_check_branch
      %263 = sbr.rel (0) target = $region21
    $region20: #{forward.1} parent=1 // pred_region
      %s265 = ssub.s32 256, 256
      %266 = vsyncadd [#allocation3], %s265
      %s267 = sshll.u32 [#allocation2], 4
      %s268 = int_to_ptr.vmem [resolvable:$true] %s267
      %273 = dma.vmem_to_hbm [thread:$0]  %s268, 256, %s4, [#allocation3], 128, 128, 8
    $region21: #{forward.1} parent=1 // pred_fallthru
      _
    // Predicated region
    $region22: #{forward.1} parent=1 // pred_check
      _
    $region23: #{forward.1} parent=1 // pred_check_branch
      %275 = sbr.rel (0) target = $region25
    $region24: #{forward.1} parent=1 // pred_region
      %276 = dma.done [#allocation3], 256
    $region25: #{forward.1} parent=1 // pred_fallthru
      _
    %277 = vsyncpa [#allocation3], 1

</llo_original>
